<compile_context>
chip_gen: v7x
topology: tpu7x:2x2x1
jax: 0.10.0
libtpu: 0.0.40
codegen_flags: <defaults>
</compile_context>

<pallas_src>
import math

import jax
import jax.numpy as jnp
from jax.experimental import pallas as pl
from jax.experimental.pallas import tpu as pltpu

_LANE = 128             # lane width of a vreg
_SUBLANE = 8            # f32 sublane count of a vreg
_MAX_TILE_ROWS = 512    # sublane-axis tile cap (multiple of 32 -> ok for all dtypes)
_MAX_TILE_COLS = 1024   # lane-axis tile cap (multiple of 128)
_FAST_PATH_BYTES = 1 << 20   # below this, plain JAX beats pallas_call overhead


def _round_up(n: int, m: int) -> int:
    return ((n + m - 1) // m) * m


def _sublane_mult(*dtypes) -> int:
    """Native sublane multiple: 8 for 4-byte, 16 for 2-byte, 32 for 1-byte dtypes."""
    m = _SUBLANE
    for dt in dtypes:
        item = jnp.dtype(dt).itemsize
        m = max(m, (_SUBLANE * 4) // max(item, 1))
    return m


def _hadamard_kernel(w_ref, x_ref, o_ref):
    # w_ref: (1, TW); x_ref / o_ref: (TB, TW). Broadcast multiply on the VPU.
    o_ref[...] = (x_ref[...] * w_ref[...]).astype(o_ref.dtype)


def go_hadamard(weight: jax.Array, x: jax.Array, *,
                force_pallas: bool = False,
                match_x_dtype: bool = False,
                donate_x: bool = False) -> jax.Array:
    """GOHadamardLayer.forward: broadcasted elementwise weight * x.

    weight: (H, W) float32; x: (..., H, W). Output dtype is
    result_type(weight, x) (torch.mul promotion) unless match_x_dtype=True.
    """
    H, W = weight.shape
    assert x.shape[-2:] == (H, W), "trailing dims of x must match weight"
    lead_shape = x.shape[:-2]
    n_lead = math.prod(lead_shape)  # == 1 for lead_shape == ()
    hw = H * W

    if match_x_dtype and weight.dtype != x.dtype:
        weight = weight.astype(x.dtype)  # NOTE: drops torch's f32 promotion
    out_dtype = jnp.result_type(weight.dtype, x.dtype)

    # Degenerate / empty shapes.
    if n_lead == 0 or hw == 0:
        return jnp.zeros(x.shape, out_dtype)

    traffic_bytes = (x.size * x.dtype.itemsize                  # read x
                     + x.size * jnp.dtype(out_dtype).itemsize   # write out
                     + weight.size * weight.dtype.itemsize)     # read weight

    # Tiny inputs: a single-step pallas_call pays ~0.35 us pipeline cost plus
    # custom-call launch overhead for a trivial VPU multiply XLA fuses for free.
    if not force_pallas and traffic_bytes < _FAST_PATH_BYTES:
        return (weight * x).astype(out_dtype)

    # Lane-dense 2-D view: spatial dims flattened onto the 128-lane axis so
    # stores are unmasked full-lane vst (except at ragged edge tiles).
    x2 = x.reshape(n_lead, hw)
    w2 = weight.reshape(1, hw)

    # Tile sizes. A block dim equal to the full array dim is always legal;
    # otherwise it must be a multiple of the native (sublane, 128) tile and
    # Pallas masks the ragged last tile -- no jnp.pad / output slice needed.
    sub = _sublane_mult(x.dtype, out_dtype)
    tw = hw if hw <= _MAX_TILE_COLS else _MAX_TILE_COLS
    tb = n_lead if n_lead <= _MAX_TILE_ROWS else _MAX_TILE_ROWS
    n_col_tiles = pl.cdiv(hw, tw)
    n_row_tiles = pl.cdiv(n_lead, tb)

    # v7x has 2 TensorCores; "parallel" semantics only help with >= 2 programs.
    if n_col_tiles * n_row_tiles < 2:
        if n_lead > sub:
            tb = _round_up(pl.cdiv(n_lead, 2), sub)
            n_row_tiles = pl.cdiv(n_lead, tb)
        elif hw > _LANE:
            tw = _round_up(pl.cdiv(hw, 2), _LANE)
            n_col_tiles = pl.cdiv(hw, tw)
        # else: too small to split -- a single program is fine.

    io_aliases = {}
    if donate_x and out_dtype == x.dtype:
        io_aliases = {1: 0}  # write the result into x's HBM buffer

    out2 = pl.pallas_call(
        _hadamard_kernel,
        out_shape=jax.ShapeDtypeStruct((n_lead, hw), out_dtype),
        grid_spec=pltpu.PrefetchScalarGridSpec(
            num_scalar_prefetch=0,
            # Lead (row) axis innermost: the weight block index depends only on
            # the outer column tile, so the broadcast weight tile stays
            # VMEM-resident across all lead iterations (no re-DMA per slab).
            grid=(n_col_tiles, n_row_tiles),
            in_specs=[
                pl.BlockSpec((1, tw), lambda c, r: (0, c)),    # weight tile
                pl.BlockSpec((tb, tw), lambda c, r: (r, c)),   # x tile
            ],
            out_specs=pl.BlockSpec((tb, tw), lambda c, r: (r, c)),
        ),
        compiler_params=pltpu.CompilerParams(
            dimension_semantics=("parallel", "parallel"),
            vmem_limit_bytes=32 * 1024 * 1024,
        ),
        cost_estimate=pl.CostEstimate(
            flops=n_lead * hw,
            transcendentals=0,
            bytes_accessed=traffic_bytes,
        ),
        input_output_aliases=io_aliases,
    )(w2, x2)

    return out2.reshape(*lead_shape, H, W)


def make_weight(H: int, W: int) -> jax.Array:
    # Deterministic stand-in for cv2.imread(...)/255.0: synthetic "grayscale
    # image" with integer pixel values in [0, 255] scaled to [0, 1].
    # TODO(synk): real module loads pretrained_weights/signals_pretrained.png.
    rows = jnp.arange(H, dtype=jnp.int32)[:, None]
    cols = jnp.arange(W, dtype=jnp.int32)[None, :]
    pixels = (rows * 37 + cols * 11) % 256
    return pixels.astype(jnp.float32) / 255.0


if __name__ == "__main__":
    key = jax.random.PRNGKey(0)
    k0, k1 = jax.random.split(key)

    # Shape implied by the module usage: small NCHW activations.
    B, C, H, W = 2, 4, 16, 16
    x = jax.random.normal(k0, (B, C, H, W), dtype=jnp.float32)
    weight = make_weight(H, W)
    ref = weight * x

    # 1) Default path: tiny input takes the plain-JAX fast path.
    out_fast = jax.block_until_ready(go_hadamard(weight, x))
    assert out_fast.shape == x.shape and out_fast.dtype == ref.dtype
    assert jnp.allclose(out_fast, ref, atol=1e-6), "fast path mismatch"

    # 2) Same shape forced through the Pallas kernel (exercises tiling path).
    out_pl = jax.block_until_ready(go_hadamard(weight, x, force_pallas=True))
    assert out_pl.shape == x.shape and out_pl.dtype == ref.dtype
    assert jnp.allclose(out_pl, ref, atol=1e-6), "pallas path mismatch"

    # 3) Ragged (non-multiple-of-(8,128)) shape through the Pallas kernel.
    H2, W2 = 24, 40
    x2 = jax.random.normal(k1, (3, 5, H2, W2), dtype=jnp.float32)
    w2 = make_weight(H2, W2)
    out2 = jax.block_until_ready(go_hadamard(w2, x2, force_pallas=True))
    assert jnp.allclose(out2, w2 * x2, atol=1e-6), "ragged pallas path mismatch"

    print("KERNEL_OK")
</pallas_src>

<mosaic_0001>
module attributes {stable_mosaic.version = 11 : i64} {
  func.func @_hadamard_kernel(%arg0: i32, %arg1: i32, %arg2: memref<1x128xf32, #tpu.memory_space<vmem>>, %arg3: memref<8x128xf32, #tpu.memory_space<vmem>>, %arg4: memref<8x128xf32, #tpu.memory_space<vmem>>) attributes {dimension_semantics = [#tpu.dimension_semantics<parallel>, #tpu.dimension_semantics<parallel>], iteration_bounds = array<i64: 2, 1>, scalar_prefetch = 0 : i64, scratch_operands = 0 : i64, tpu.core_type = #tpu.core_type<tc>, window_params = [{transform_indices = @transform_0, window_bounds = array<i64: 1, 128>}, {transform_indices = @transform_1, window_bounds = array<i64: 8, 128>}, {transform_indices = @transform_2, window_bounds = array<i64: 8, 128>}]} {
    %c0 = arith.constant 0 : index
    %c0_0 = arith.constant 0 : index
    %0 = vector.load %arg3[%c0, %c0_0] : memref<8x128xf32, #tpu.memory_space<vmem>>, vector<8x128xf32>
    %c0_1 = arith.constant 0 : index
    %c0_2 = arith.constant 0 : index
    %1 = vector.load %arg2[%c0_1, %c0_2] : memref<1x128xf32, #tpu.memory_space<vmem>>, vector<1x128xf32>
    %2 = vector.broadcast %1 : vector<1x128xf32> to vector<8x128xf32>
    %3 = arith.mulf %0, %2 : vector<8x128xf32>
    %c0_3 = arith.constant 0 : index
    %c0_4 = arith.constant 0 : index
    %4 = vector.load %arg4[%c0_3, %c0_4] : memref<8x128xf32, #tpu.memory_space<vmem>>, vector<8x128xf32>
    tpu.vector_store %arg4[%c0_3, %c0_4], %3 {strides = array<i32>} : memref<8x128xf32, #tpu.memory_space<vmem>>, vector<8x128xf32>,
    return
  }
  func.func @transform_0(%arg0: i32, %arg1: i32) -> (i32, i32) {
    %c0_i32 = arith.constant 0 : i32
    %c0_i32_0 = arith.constant 0 : i32
    return %c0_i32, %arg0 : i32, i32
  }
  func.func @transform_1(%arg0: i32, %arg1: i32) -> (i32, i32) {
    %c0_i32 = arith.constant 0 : i32
    return %arg1, %arg0 : i32, i32
  }
  func.func @transform_2(%arg0: i32, %arg1: i32) -> (i32, i32) {
    %c0_i32 = arith.constant 0 : i32
    return %arg1, %arg0 : i32, i32
  }
}

</mosaic_0001>

<llo_original>
// kernel: tpu_custom_call.1
$region0: #{tpu_custom_call.1}
  #allocation0 [shape = 'u32[]', space=smem, size = 0x4, offset = 0x4, fixed_abs, tag = 'smem constant byte address 0x4 - core index']
  #allocation1 [shape = 'u32[144,128]{1,0:T(1,128)}', space=vmem, size = 0x12000, scoped, tag = 'internal scratch']
  %s0 = inlined_call_operand.hbm [shape: f32[1,256], index: 0, kind: input, shape index: {}]
  %s1 = inlined_call_operand.hbm [shape: f32[8,256], index: 1, kind: input, shape index: {}]
  %s2 = inlined_call_operand.hbm [shape: f32[8,256], index: 2, kind: output, shape index: {}]
  %s3 = sld [smem:[#allocation0]]
  $region49: #{tpu_custom_call.1} parent=0
    _
  %s5 = ssub.s32 1, %s3
  %s6 = scalar_select 0, %s5, %s3
  $region1: #{tpu_custom_call.1} parent=0
    #allocation2 [shape = 'u8[1024]{0}', space=vmem, size = 0x400, scoped, tag = 'input window, operand 0']
    #allocation3 [shape = 's32[2]{0}', space=sflag, size = 0x8, scoped, tag = 'scoped memory for tpu_custom_call.1']
    #allocation4 [shape = 's32[2]{0}', space=sflag, size = 0x8, scoped, tag = 'scoped memory for tpu_custom_call.1']
    #allocation5 [shape = 'u8[8192]{0}', space=vmem, size = 0x2000, scoped, tag = 'input window, operand 1']
    #allocation6 [shape = 's32[2]{0}', space=sflag, size = 0x8, scoped, tag = 'scoped memory for tpu_custom_call.1']
    #allocation7 [shape = 'u8[8192]{0}', space=vmem, size = 0x2000, scoped, tag = 'output window, operand 0']
    %7 = vsyncpa [#allocation3], 0
    %s8 = scalar_lea.sflag [#allocation3], 1
    %9 = vsyncpa %s8, 0
    %10 = vsyncpa [#allocation6], 0
    %s11 = scalar_lea.sflag [#allocation6], 1
    %12 = vsyncpa %s11, 0
    %13 = vsyncpa [#allocation4], 0
    %s14 = scalar_lea.sflag [#allocation4], 1
    %15 = vsyncpa %s14, 0
    loop: start=0, step=1, limit=4
    $region2: #{tpu_custom_call.1} parent=1 // loop_pre_header
      _
    $region3: #{tpu_custom_call.1} parent=1 // loop_header
      %s17 = sphi 0, %s21
      %p18 = scmp.ge.s32.totalorder %s17, 4
      %s24 = sphi 0, %s36
      %s25 = sphi 0, %s32
      %s26 = sphi 0, %s24
      %s27 = sphi 0, %s25
      %s28 = sphi 0, %s26
      %s29 = sphi 0, %s27
      %s39 = sphi 0, %s41
      %s42 = sphi 0, %s39
      %s43 = sphi 0, %s42
      %s59 = sphi 0, %s43
      %s67 = sphi 0, %s69
      %s70 = sphi 0, %s67
      %s71 = sphi 0, %s70
      %s87 = sphi 0, %s71
      %s95 = sphi 0, %s97
      %s98 = sphi 0, %s95
      %s99 = sphi 0, %s98
      %s115 = sphi 0, %s99
    $region4: #{tpu_custom_call.1} parent=1 // loop_header_branch
      %20 = sbr.rel (%p18) target = $region8
    $region5: #{tpu_custom_call.1} parent=1 // loop_body
      %s22 = ssub.s32 %s17, 1
      %s23 = ssub.s32 %s17, 2
      %s30 = sadd.s32 1, %s25
      %p31 = scmp.ge.s32.totalorder %s30, 1
      %s32 = scalar_select %p31, 0, %s30
      %s33 = sadd.s32 1, %s24
      %s34 = scalar_select %p31, %s33, %s24
      %p35 = scmp.ge.s32.totalorder %s34, 2
      %s36 = scalar_select %p35, 0, %s34
      %s37 = ssub.s32 %s24, %s36
      %p38 = scmp.eq.s32.totalorder %s37, 0
      %s40 = sadd.s32 %s39, 1
      %s41 = scalar_select %p38, %s39, %s40
      %p44 = pneg %p38
      %p45 = scmp.eq.s32.totalorder %s17, 1
      %p46 = por %p44, %p45
      %p47 = scmp.ne.s32.totalorder %s39, %s42
      %p48 = scmp.eq.s32.totalorder %s17, 0
      %p49 = por %p47, %p48
      %p50 = scmp.ne.s32.totalorder %s39, %s42
      %p51 = scmp.eq.s32.totalorder %s22, 1
      %p52 = por %p50, %p51
      %p53 = scmp.ne.s32.totalorder %s42, %s43
      %p54 = scmp.eq.s32.totalorder %s22, 0
      %p55 = por %p53, %p54
      %p56 = scmp.ne.s32.totalorder %s42, %s43
      %p57 = scmp.eq.s32.totalorder %s23, 1
      %p58 = por %p56, %p57
      %p60 = scmp.ne.s32.totalorder %s43, %s59
      %p61 = scmp.eq.s32.totalorder %s23, 0
      %p62 = por %p60, %p61
      %s63 = ssub.s32 %s25, %s32
      %s64 = ssub.s32 %s24, %s36
      %s65 = sor.u32 %s63, %s64
      %p66 = scmp.eq.s32.totalorder %s65, 0
      %s68 = sadd.s32 %s67, 1
      %s69 = scalar_select %p66, %s67, %s68
      %p72 = pneg %p66
      %p73 = scmp.eq.s32.totalorder %s17, 1
      %p74 = por %p72, %p73
      %p75 = scmp.ne.s32.totalorder %s67, %s70
      %p76 = scmp.eq.s32.totalorder %s17, 0
      %p77 = por %p75, %p76
      %p78 = scmp.ne.s32.totalorder %s67, %s70
      %p79 = scmp.eq.s32.totalorder %s22, 1
      %p80 = por %p78, %p79
      %p81 = scmp.ne.s32.totalorder %s70, %s71
      %p82 = scmp.eq.s32.totalorder %s22, 0
      %p83 = por %p81, %p82
      %p84 = scmp.ne.s32.totalorder %s70, %s71
      %p85 = scmp.eq.s32.totalorder %s23, 1
      %p86 = por %p84, %p85
      %p88 = scmp.ne.s32.totalorder %s71, %s87
      %p89 = scmp.eq.s32.totalorder %s23, 0
      %p90 = por %p88, %p89
      %s91 = ssub.s32 %s25, %s32
      %s92 = ssub.s32 %s24, %s36
      %s93 = sor.u32 %s91, %s92
      %p94 = scmp.eq.s32.totalorder %s93, 0
      %s96 = sadd.s32 %s95, 1
      %s97 = scalar_select %p94, %s95, %s96
      %p100 = pneg %p94
      %p101 = scmp.eq.s32.totalorder %s17, 1
      %p102 = por %p100, %p101
      %p103 = scmp.ne.s32.totalorder %s95, %s98
      %p104 = scmp.eq.s32.totalorder %s17, 0
      %p105 = por %p103, %p104
      %p106 = scmp.ne.s32.totalorder %s95, %s98
      %p107 = scmp.eq.s32.totalorder %s22, 1
      %p108 = por %p106, %p107
      %p109 = scmp.ne.s32.totalorder %s98, %s99
      %p110 = scmp.eq.s32.totalorder %s22, 0
      %p111 = por %p109, %p110
      %p112 = scmp.ne.s32.totalorder %s98, %s99
      %p113 = scmp.eq.s32.totalorder %s23, 1
      %p114 = por %p112, %p113
      %p116 = scmp.ne.s32.totalorder %s99, %s115
      %p117 = scmp.eq.s32.totalorder %s23, 0
      %p118 = por %p116, %p117
      %p119 = scmp.le.s32.totalorder 1, %s17
      %p120 = scmp.lt.s32.totalorder %s17, 3
      %p121 = pnand %p119, %p120
      %p122 = pneg %p121
      // Predicated region
      $region9: #{tpu_custom_call.1} parent=5 // pred_check
        _
      $region10: #{tpu_custom_call.1} parent=5 // pred_check_branch
        %124 = sbr.rel (%p121) target = $region12
      $region11: #{tpu_custom_call.1} parent=5 // pred_region
        %s125 = ssub.s32 %s17, 1
      $region12: #{tpu_custom_call.1} parent=5 // pred_fallthru
        _
      %p126 = scmp.lt.s32.totalorder %s17, 2
      // Predicated region
      $region13: #{tpu_custom_call.1} parent=5 // pred_check
        %p127 = pneg %p126
      $region14: #{tpu_custom_call.1} parent=5 // pred_check_branch
        %129 = sbr.rel (%p127) target = $region16
      $region15: #{tpu_custom_call.1} parent=5 // pred_region
        // Predicated region
        $region17: #{tpu_custom_call.1} parent=15 // pred_check
          %p130 = pneg %p49
        $region18: #{tpu_custom_call.1} parent=15 // pred_check_branch
          %132 = sbr.rel (%p130) target = $region20
        $region19: #{tpu_custom_call.1} parent=15 // pred_region
          %s133 = sand.u32 %s39, 1
          %s134 = scalar_lea.sflag [#allocation3], %s133
          %s135 = sand.u32 %s39, 1
          %s136 = scalar_lea.vmem [#allocation2], %s135
          %s138 = ssub.s32 16, 16
          %139 = vsyncadd %s134, %s138
          %s140 = smul.addr %s24, 16
          %s141 = scalar_lea.hbm %s0, %s140
          %s143 = sshll.u32 %s136, 4
          %s144 = int_to_ptr.vmem [resolvable:$true] %s143
          %146 = dma.hbm_to_vmem [thread:$0]  %s141, 16, %s144, %s134
        $region20: #{tpu_custom_call.1} parent=15 // pred_fallthru
          _
        // Predicated region
        $region21: #{tpu_custom_call.1} parent=15 // pred_check
          %p147 = pneg %p77
        $region22: #{tpu_custom_call.1} parent=15 // pred_check_branch
          %149 = sbr.rel (%p147) target = $region24
        $region23: #{tpu_custom_call.1} parent=15 // pred_region
          %s150 = sand.u32 %s67, 1
          %s151 = scalar_lea.sflag [#allocation6], %s150
          %s152 = sand.u32 %s67, 1
          %s153 = smul.addr %s152, 8
          %s154 = scalar_lea.vmem [#allocation5], %s153
          %s156 = ssub.s32 128, 128
          %157 = vsyncadd %s151, %s156
          %s158 = smul.addr %s25, 2
          %s159 = sadd.s32 %s24, %s158
          %s160 = smul.addr %s159, 128
          %s161 = scalar_lea.hbm %s1, %s160
          %s163 = sshll.u32 %s154, 4
          %s164 = int_to_ptr.vmem [resolvable:$true] %s163
          %166 = dma.hbm_to_vmem [thread:$0]  %s161, 128, %s164, %s151
        $region24: #{tpu_custom_call.1} parent=15 // pred_fallthru
          _
      $region16: #{tpu_custom_call.1} parent=5 // pred_fallthru
        _
      %p167 = scmp.le.s32.totalorder 1, %s17
      %p168 = scmp.lt.s32.totalorder %s17, 3
      %p169 = pnand %p167, %p168
      %p170 = pneg %p169
      // Predicated region
      $region25: #{tpu_custom_call.1} parent=5 // pred_check
        _
      $region26: #{tpu_custom_call.1} parent=5 // pred_check_branch
        %172 = sbr.rel (%p169) target = $region28
      $region27: #{tpu_custom_call.1} parent=5 // pred_region
        %s173 = ssub.s32 %s17, 1
        %s174 = sand.u32 %s42, 1
        %s175 = scalar_lea.sflag [#allocation3], %s174
        %s176 = sand.u32 %s42, 1
        %s177 = scalar_lea.vmem [#allocation2], %s176
        // Predicated region
        $region29: #{tpu_custom_call.1} parent=27 // pred_check
          %p178 = pneg %p55
        $region30: #{tpu_custom_call.1} parent=27 // pred_check_branch
          %180 = sbr.rel (%p178) target = $region32
        $region31: #{tpu_custom_call.1} parent=27 // pred_region
          %181 = dma.done %s175, 16
        $region32: #{tpu_custom_call.1} parent=27 // pred_fallthru
          _
        %s182 = sand.u32 %s70, 1
        %s183 = scalar_lea.sflag [#allocation6], %s182
        %s184 = sand.u32 %s70, 1
        %s185 = smul.addr %s184, 8
        %s186 = scalar_lea.vmem [#allocation5], %s185
        // Predicated region
        $region33: #{tpu_custom_call.1} parent=27 // pred_check
          %p187 = pneg %p83
        $region34: #{tpu_custom_call.1} parent=27 // pred_check_branch
          %189 = sbr.rel (%p187) target = $region36
        $region35: #{tpu_custom_call.1} parent=27 // pred_region
          %190 = dma.done %s183, 128
        $region36: #{tpu_custom_call.1} parent=27 // pred_fallthru
          _
        %s191 = sand.u32 %s42, 1
        %s192 = scalar_lea.sflag [#allocation3], %s191
        %s193 = sand.u32 %s42, 1
        %s194 = scalar_lea.vmem [#allocation2], %s193
        %p195 = pneg %p55
        %p196 = pneg %p52
        %s197 = sand.u32 %s70, 1
        %s198 = scalar_lea.sflag [#allocation6], %s197
        %s199 = sand.u32 %s70, 1
        %s200 = smul.addr %s199, 8
        %s201 = scalar_lea.vmem [#allocation5], %s200
        %p202 = pneg %p83
        %p203 = pneg %p80
        %p204 = pneg %p111
        %p205 = pneg %p108
        %s206 = sand.u32 %s98, 1
        %s207 = scalar_lea.sflag [#allocation4], %s206
        %s208 = sand.u32 %s98, 1
        %s209 = smul.addr %s208, 8
        %s210 = scalar_lea.vmem [#allocation7], %s209
        %v211 = vld [vmem:[%s186] sm:$0xff]
        %v212 = vld [vmem:[%s177] sm:$0x1]
        %v214 = vlaneseq
        %v215 = vshrl.u32 %v214, 7
        %v216 = vsub.s32 0, %v215
        %v217 = vrot.slane %v212, %v216
        %v219 = vmul.f32 %v211, %v217
        %220 = vst [vmem:[%s210] sm:$0xff] %v219
        %s221 = sand.u32 %s98, 1
        %s222 = scalar_lea.sflag [#allocation4], %s221
        %s223 = sand.u32 %s98, 1
        %s224 = smul.addr %s223, 8
        %s225 = scalar_lea.vmem [#allocation7], %s224
        // Predicated region
        $region37: #{tpu_custom_call.1} parent=27 // pred_check
          %p226 = pneg %p108
        $region38: #{tpu_custom_call.1} parent=27 // pred_check_branch
          %228 = sbr.rel (%p226) target = $region40
        $region39: #{tpu_custom_call.1} parent=27 // pred_region
          %s230 = ssub.s32 128, 128
          %231 = vsyncadd %s222, %s230
          %s232 = smul.addr %s27, 2
          %s233 = sadd.s32 %s26, %s232
          %s234 = smul.addr %s233, 128
          %s235 = scalar_lea.hbm %s2, %s234
          %s237 = sshll.u32 %s225, 4
          %s238 = int_to_ptr.vmem [resolvable:$true] %s237
          %240 = dma.vmem_to_hbm [thread:$0]  %s238, 128, %s235, %s222
        $region40: #{tpu_custom_call.1} parent=27 // pred_fallthru
          _
      $region28: #{tpu_custom_call.1} parent=5 // pred_fallthru
        _
      %p241 = scmp.le.s32.totalorder 2, %s17
      // Predicated region
      $region41: #{tpu_custom_call.1} parent=5 // pred_check
        %p242 = pneg %p241
      $region42: #{tpu_custom_call.1} parent=5 // pred_check_branch
        %244 = sbr.rel (%p242) target = $region44
      $region43: #{tpu_custom_call.1} parent=5 // pred_region
        %s245 = ssub.s32 %s17, 2
        // Predicated region
        $region45: #{tpu_custom_call.1} parent=43 // pred_check
          %p246 = pneg %p114
        $region46: #{tpu_custom_call.1} parent=43 // pred_check_branch
          %248 = sbr.rel (%p246) target = $region48
        $region47: #{tpu_custom_call.1} parent=43 // pred_region
          %s249 = sand.u32 %s99, 1
          %s250 = scalar_lea.sflag [#allocation4], %s249
          %s251 = sand.u32 %s99, 1
          %s252 = smul.addr %s251, 8
          %s253 = scalar_lea.vmem [#allocation7], %s252
          %254 = dma.done %s250, 128
        $region48: #{tpu_custom_call.1} parent=43 // pred_fallthru
          _
      $region44: #{tpu_custom_call.1} parent=5 // pred_fallthru
        _
    $region6: #{tpu_custom_call.1} parent=1 // loop_footer
      %s21 = sadd.s32 1, %s17
    $region7: #{tpu_custom_call.1} parent=1 // loop_footer_branch
      %16 = sbr.rel target = $region3
    $region8: #{tpu_custom_call.1} parent=1 // loop_exit
      _
    %255 = vsyncpa [#allocation3], 1
    %s256 = scalar_lea.sflag [#allocation3], 1
    %257 = vsyncpa %s256, 1
    %258 = vsyncpa [#allocation6], 1
    %s259 = scalar_lea.sflag [#allocation6], 1
    %260 = vsyncpa %s259, 1
    %261 = vsyncpa [#allocation4], 1
    %s262 = scalar_lea.sflag [#allocation4], 1
    %263 = vsyncpa %s262, 1

</llo_original>
